<compile_context>
chip_gen: v6e
topology: v6e:2x2x1
jax: 0.10.0
libtpu: 0.0.40
codegen_flags: <defaults>
</compile_context>

<pallas_src>
import jax
import jax.numpy as jnp
from jax.experimental import pallas as pl
from jax.experimental.pallas import tpu as pltpu

NUM_CLASSES = 2
IN_DIM = 256
HID_DIM = 128
# Batch-tile rows. At TB=8192 (f32 x): 2 x 8 MiB x-buffers + ~0.3 MiB weights +
# ~0.13 MiB output buffers ~= 16.5 MiB -- inside the default scoped VMEM everywhere.
DEFAULT_TB = 8192
# Don't shrink tiles below this when splitting for multi-core: per-step overhead
# (~0.35 us) starts to show below ~1-2 MiB tiles.
_MIN_TB = 1024


def fc_mlp_kernel(x_ref, w1_ref, b1_ref, w2_ref, b2_ref, o_ref):
    # fc1 on the MXU: bf16 operands, f32 accumulation. Bias add + ReLU in f32 (VPU).
    x = x_ref[...].astype(jnp.bfloat16)
    h = jnp.dot(x, w1_ref[...].astype(jnp.bfloat16),
                preferred_element_type=jnp.float32)
    h = jnp.maximum(h + b1_ref[...], 0.0)          # b1 is (1, HID_DIM), broadcasts over batch
    # fc2: tiny [HID_DIM, NUM_CLASSES] matmul; negligible while the kernel is
    # x-read bandwidth bound.
    # TODO(synk): if a v7x bundle dump shows the MXU as the binding slot, move this
    # off the MXU (per-column broadcast-mul + lane reduction) instead of widening N.
    out = jnp.dot(h.astype(jnp.bfloat16), w2_ref[...].astype(jnp.bfloat16),
                  preferred_element_type=jnp.float32)
    o_ref[...] = (out + b2_ref[...]).astype(o_ref.dtype)


def _round_up(n, m):
    return ((n + m - 1) // m) * m


def _choose_tb(batch, tb_max):
    """Pick a sublane-aligned batch tile."""
    b8 = _round_up(batch, 8)
    tb = min(_round_up(tb_max, 8), b8)
    # For large batches, keep >= 4 grid steps so the "parallel" batch axis can
    # shard across v7x's two TensorCores and each core still double-buffers.
    if b8 >= 4 * _MIN_TB:
        tb = min(tb, max(_MIN_TB, _round_up(pl.cdiv(b8, 4), 8)))
    return max(8, tb)


def fc_model_forward(x, w1, b1, w2, b2, *, tb=DEFAULT_TB):
    """x: [B, 256] (f32 or bf16). Returns [B, NUM_CLASSES] f32."""
    B = x.shape[0]
    assert x.shape[1] == IN_DIM, "fc1 expects 256 input features"
    TB = _choose_tb(B, tb)

    return pl.pallas_call(
        fc_mlp_kernel,
        out_shape=jax.ShapeDtypeStruct((B, NUM_CLASSES), jnp.float32),
        grid_spec=pltpu.PrefetchScalarGridSpec(
            num_scalar_prefetch=0,
            grid=(pl.cdiv(B, TB),),
            in_specs=[
                # x: streamed per batch tile (auto double-buffered). The ragged
                # last tile is handled by Pallas; its garbage rows only feed
                # out-of-bounds output rows, whose writes are dropped.
                pl.BlockSpec((TB, IN_DIM), lambda i: (i, 0)),
                # Weights / biases: constant index_map -> DMA'd once, VMEM-resident.
                pl.BlockSpec((IN_DIM, HID_DIM), lambda i: (0, 0)),
                pl.BlockSpec((1, HID_DIM), lambda i: (0, 0)),
                pl.BlockSpec((HID_DIM, NUM_CLASSES), lambda i: (0, 0)),
                pl.BlockSpec((1, NUM_CLASSES), lambda i: (0, 0)),
            ],
            out_specs=pl.BlockSpec((TB, NUM_CLASSES), lambda i: (i, 0)),
        ),
        compiler_params=pltpu.CompilerParams(
            # Batch tiles are independent -> shard across both TCs on v7x.
            dimension_semantics=("parallel",),
        ),
    )(x, w1, b1, w2, b2)


def init_params(key):
    """Deterministic init mirroring nn.Linear default (uniform +/- 1/sqrt(fan_in)).

    Weights stored as [in, out] (transposed vs. PyTorch's [out, in]) so the kernel
    computes x @ W directly.
    """
    k1, k2, k3, k4 = jax.random.split(key, 4)
    bound1 = 1.0 / (IN_DIM ** 0.5)
    bound2 = 1.0 / (HID_DIM ** 0.5)
    w1 = jax.random.uniform(k1, (IN_DIM, HID_DIM), jnp.float32, -bound1, bound1)
    b1 = jax.random.uniform(k2, (1, HID_DIM), jnp.float32, -bound1, bound1)
    w2 = jax.random.uniform(k3, (HID_DIM, NUM_CLASSES), jnp.float32, -bound2, bound2)
    b2 = jax.random.uniform(k4, (1, NUM_CLASSES), jnp.float32, -bound2, bound2)
    return w1, b1, w2, b2


def ref_forward_bf16(x, w1, b1, w2, b2):
    """Reference with the kernel's arithmetic: bf16 operands, f32 accumulation."""
    h = jnp.dot(x.astype(jnp.bfloat16), w1.astype(jnp.bfloat16),
                preferred_element_type=jnp.float32) + b1
    h = jnp.maximum(h, 0.0)
    return jnp.dot(h.astype(jnp.bfloat16), w2.astype(jnp.bfloat16),
                   preferred_element_type=jnp.float32) + b2


def ref_forward_f32(x, w1, b1, w2, b2):
    """Plain f32 reference (semantic sanity check; looser tolerance vs bf16 MXU)."""
    h = jnp.maximum(x @ w1 + b1, 0.0)
    return h @ w2 + b2


if __name__ == "__main__":
    key = jax.random.PRNGKey(0)
    kx, kx2, kp = jax.random.split(key, 3)
    w1, b1, w2, b2 = init_params(kp)

    # Small shape consistent with the module (fc1 expects 256 features).
    B = 8
    x = jax.random.normal(kx, (B, IN_DIM), jnp.float32)
    out = jax.block_until_ready(fc_model_forward(x, w1, b1, w2, b2))
    assert out.shape == (B, NUM_CLASSES)
    assert jnp.allclose(out, ref_forward_bf16(x, w1, b1, w2, b2),
                        atol=1e-4, rtol=1e-4), "mismatch vs bf16 reference (B=8)"
    assert jnp.allclose(out, ref_forward_f32(x, w1, b1, w2, b2),
                        atol=5e-2, rtol=0), "mismatch vs f32 reference (B=8)"

    # Ragged multi-step grid (B not a multiple of the tile), no wrapper-side pad.
    B2 = 1000
    x2 = jax.random.normal(kx2, (B2, IN_DIM), jnp.float32)
    out2 = jax.block_until_ready(fc_model_forward(x2, w1, b1, w2, b2, tb=256))
    assert out2.shape == (B2, NUM_CLASSES)
    assert jnp.allclose(out2, ref_forward_bf16(x2, w1, b1, w2, b2),
                        atol=1e-4, rtol=1e-4), "mismatch vs bf16 reference (B=1000)"

    # bf16 activations at the pallas_call boundary (halves the dominant x HBM reads).
    x2_bf16 = x2.astype(jnp.bfloat16)
    out3 = jax.block_until_ready(fc_model_forward(x2_bf16, w1, b1, w2, b2, tb=256))
    assert out3.shape == (B2, NUM_CLASSES)
    assert jnp.allclose(out3, ref_forward_bf16(x2_bf16, w1, b1, w2, b2),
                        atol=1e-4, rtol=1e-4), "mismatch vs bf16 reference (bf16 x)"

    print("KERNEL_OK")
</pallas_src>

<mosaic_0001>
module attributes {stable_mosaic.version = 11 : i64} {
  func.func @fc_mlp_kernel(%arg0: i32, %arg1: memref<8x256xf32, #tpu.memory_space<vmem>>, %arg2: memref<256x128xf32, #tpu.memory_space<vmem>>, %arg3: memref<1x128xf32, #tpu.memory_space<vmem>>, %arg4: memref<128x2xf32, #tpu.memory_space<vmem>>, %arg5: memref<1x2xf32, #tpu.memory_space<vmem>>, %arg6: memref<8x2xf32, #tpu.memory_space<vmem>>) attributes {dimension_semantics = [#tpu.dimension_semantics<parallel>], iteration_bounds = array<i64: 1>, scalar_prefetch = 0 : i64, scratch_operands = 0 : i64, tpu.core_type = #tpu.core_type<tc>, window_params = [{transform_indices = @transform_0, window_bounds = array<i64: 8, 256>}, {pipeline_mode = #tpu.pipeline_mode<synchronous>, transform_indices = @transform_1, window_bounds = array<i64: 256, 128>}, {pipeline_mode = #tpu.pipeline_mode<synchronous>, transform_indices = @transform_2, window_bounds = array<i64: 1, 128>}, {pipeline_mode = #tpu.pipeline_mode<synchronous>, transform_indices = @transform_3, window_bounds = array<i64: 128, 2>}, {pipeline_mode = #tpu.pipeline_mode<synchronous>, transform_indices = @transform_4, window_bounds = array<i64: 1, 2>}, {transform_indices = @transform_5, window_bounds = array<i64: 8, 2>}]} {
    %c0 = arith.constant 0 : index
    %c0_0 = arith.constant 0 : index
    %0 = vector.load %arg1[%c0, %c0_0] : memref<8x256xf32, #tpu.memory_space<vmem>>, vector<8x256xf32>
    %1 = arith.truncf %0 : vector<8x256xf32> to vector<8x256xbf16>
    %c0_1 = arith.constant 0 : index
    %c0_2 = arith.constant 0 : index
    %2 = vector.load %arg2[%c0_1, %c0_2] : memref<256x128xf32, #tpu.memory_space<vmem>>, vector<256x128xf32>
    %3 = arith.truncf %2 : vector<256x128xf32> to vector<256x128xbf16>
    %cst = arith.constant dense<0.000000e+00> : vector<8x128xf32>
    %4 = tpu.matmul %1, %3, %cst {dimension_numbers = #tpu.dot_dimension_numbers<[1], [0], [0], [1], [0, 0, 1, 1], [], []>} : vector<8x256xbf16>, vector<256x128xbf16>, vector<8x128xf32> -> vector<8x128xf32>
    %c0_3 = arith.constant 0 : index
    %c0_4 = arith.constant 0 : index
    %5 = vector.load %arg3[%c0_3, %c0_4] : memref<1x128xf32, #tpu.memory_space<vmem>>, vector<1x128xf32>
    %6 = vector.broadcast %5 : vector<1x128xf32> to vector<8x128xf32>
    %7 = arith.addf %4, %6 : vector<8x128xf32>
    %cst_5 = arith.constant 0.000000e+00 : f32
    %8 = vector.broadcast %cst_5 : f32 to vector<8x128xf32>
    %9 = arith.maximumf %7, %8 : vector<8x128xf32>
    %10 = arith.truncf %9 : vector<8x128xf32> to vector<8x128xbf16>
    %c0_6 = arith.constant 0 : index
    %c0_7 = arith.constant 0 : index
    %11 = vector.load %arg4[%c0_6, %c0_7] : memref<128x2xf32, #tpu.memory_space<vmem>>, vector<128x2xf32>
    %12 = arith.truncf %11 : vector<128x2xf32> to vector<128x2xbf16>
    %cst_8 = arith.constant dense<0.000000e+00> : vector<8x2xf32>
    %13 = tpu.matmul %10, %12, %cst_8 {dimension_numbers = #tpu.dot_dimension_numbers<[1], [0], [0], [1], [0, 0, 1, 1], [], []>} : vector<8x128xbf16>, vector<128x2xbf16>, vector<8x2xf32> -> vector<8x2xf32>
    %c0_9 = arith.constant 0 : index
    %c0_10 = arith.constant 0 : index
    %14 = vector.load %arg5[%c0_9, %c0_10] : memref<1x2xf32, #tpu.memory_space<vmem>>, vector<1x2xf32>
    %15 = vector.broadcast %14 : vector<1x2xf32> to vector<8x2xf32>
    %16 = arith.addf %13, %15 : vector<8x2xf32>
    %c0_11 = arith.constant 0 : index
    %c0_12 = arith.constant 0 : index
    %17 = vector.load %arg6[%c0_11, %c0_12] : memref<8x2xf32, #tpu.memory_space<vmem>>, vector<8x2xf32>
    tpu.vector_store %arg6[%c0_11, %c0_12], %16 {strides = array<i32>} : memref<8x2xf32, #tpu.memory_space<vmem>>, vector<8x2xf32>,
    return
  }
  func.func @transform_0(%arg0: i32) -> (i32, i32) {
    %c0_i32 = arith.constant 0 : i32
    %c0_i32_0 = arith.constant 0 : i32
    return %arg0, %c0_i32 : i32, i32
  }
  func.func @transform_1(%arg0: i32) -> (i32, i32) {
    %c0_i32 = arith.constant 0 : i32
    %c0_i32_0 = arith.constant 0 : i32
    %c0_i32_1 = arith.constant 0 : i32
    return %c0_i32, %c0_i32_0 : i32, i32
  }
  func.func @transform_2(%arg0: i32) -> (i32, i32) {
    %c0_i32 = arith.constant 0 : i32
    %c0_i32_0 = arith.constant 0 : i32
    %c0_i32_1 = arith.constant 0 : i32
    return %c0_i32, %c0_i32_0 : i32, i32
  }
  func.func @transform_3(%arg0: i32) -> (i32, i32) {
    %c0_i32 = arith.constant 0 : i32
    %c0_i32_0 = arith.constant 0 : i32
    %c0_i32_1 = arith.constant 0 : i32
    return %c0_i32, %c0_i32_0 : i32, i32
  }
  func.func @transform_4(%arg0: i32) -> (i32, i32) {
    %c0_i32 = arith.constant 0 : i32
    %c0_i32_0 = arith.constant 0 : i32
    %c0_i32_1 = arith.constant 0 : i32
    return %c0_i32, %c0_i32_0 : i32, i32
  }
  func.func @transform_5(%arg0: i32) -> (i32, i32) {
    %c0_i32 = arith.constant 0 : i32
    %c0_i32_0 = arith.constant 0 : i32
    return %arg0, %c0_i32 : i32, i32
  }
}

</mosaic_0001>

<llo_original>
// kernel: tpu_custom_call.1
$region0: #{tpu_custom_call.1}
  #allocation0 [shape = 'u32[]', space=smem, size = 0x4, offset = 0x4, fixed_abs, tag = 'smem constant byte address 0x4 - core index']
  #allocation1 [shape = 'u32[144,128]{1,0:T(1,128)}', space=vmem, size = 0x12000, scoped, tag = 'internal scratch']
  %s0 = inlined_call_operand.vmem [shape: f32[8,256], index: 0, kind: input, shape index: {}]
  %s1 = inlined_call_operand.hbm [shape: f32[256,128], index: 1, kind: input, shape index: {}]
  %s2 = inlined_call_operand.vmem [shape: f32[1,128], index: 2, kind: input, shape index: {}]
  %s3 = inlined_call_operand.vmem [shape: f32[128,2], index: 3, kind: input, shape index: {}]
  %s4 = inlined_call_operand.vmem [shape: f32[1,2], index: 4, kind: input, shape index: {}]
  %s5 = inlined_call_operand.vmem [shape: f32[8,2], index: 5, kind: output, shape index: {}]
  %s6 = sld [smem:[#allocation0]]
  $region34: #{tpu_custom_call.1} parent=0
    _
  %s8 = ssub.s32 1, %s6
  %s9 = scalar_select 0, %s8, %s6
  $region1: #{tpu_custom_call.1} parent=0
    #allocation2 [shape = 'u8[131072]{0}', space=vmem, size = 0x20000, scoped, tag = 'input window, operand 1, single buffered']
    #allocation3 [shape = 's32[1]{0}', space=sflag, size = 0x4, scoped, tag = 'scoped memory for tpu_custom_call.1']
    %10 = vsyncpa [#allocation3], 0
    // Predicated region
    $region2: #{tpu_custom_call.1} parent=1 // pred_check
      _
    $region3: #{tpu_custom_call.1} parent=1 // pred_check_branch
      %12 = sbr.rel (0) target = $region5
    $region4: #{tpu_custom_call.1} parent=1 // pred_region
      _
    $region5: #{tpu_custom_call.1} parent=1 // pred_fallthru
      _
    // Predicated region
    $region6: #{tpu_custom_call.1} parent=1 // pred_check
      _
    $region7: #{tpu_custom_call.1} parent=1 // pred_check_branch
      %14 = sbr.rel (0) target = $region9
    $region8: #{tpu_custom_call.1} parent=1 // pred_region
      %s16 = ssub.s32 4096, 4096
      %17 = vsyncadd [#allocation3], %s16
      %s18 = sshll.u32 [#allocation2], 4
      %s19 = int_to_ptr.vmem [resolvable:$true] %s18
      %24 = dma.hbm_to_vmem [thread:$0]  %s1, 4096, %s19, [#allocation3], 128, 128, 8
    $region9: #{tpu_custom_call.1} parent=1 // pred_fallthru
      _
    // Predicated region
    $region10: #{tpu_custom_call.1} parent=1 // pred_check
      _
    $region11: #{tpu_custom_call.1} parent=1 // pred_check_branch
      %26 = sbr.rel (0) target = $region13
    $region12: #{tpu_custom_call.1} parent=1 // pred_region
      _
    $region13: #{tpu_custom_call.1} parent=1 // pred_fallthru
      _
    // Predicated region
    $region14: #{tpu_custom_call.1} parent=1 // pred_check
      _
    $region15: #{tpu_custom_call.1} parent=1 // pred_check_branch
      %28 = sbr.rel (0) target = $region17
    $region16: #{tpu_custom_call.1} parent=1 // pred_region
      _
    $region17: #{tpu_custom_call.1} parent=1 // pred_fallthru
      _
    // Predicated region
    $region18: #{tpu_custom_call.1} parent=1 // pred_check
      _
    $region19: #{tpu_custom_call.1} parent=1 // pred_check_branch
      %30 = sbr.rel (0) target = $region21
    $region20: #{tpu_custom_call.1} parent=1 // pred_region
      _
    $region21: #{tpu_custom_call.1} parent=1 // pred_fallthru
      _
    // Predicated region
    $region22: #{tpu_custom_call.1} parent=1 // pred_check
      _
    $region23: #{tpu_custom_call.1} parent=1 // pred_check_branch
      %32 = sbr.rel (0) target = $region25
    $region24: #{tpu_custom_call.1} parent=1 // pred_region
      %33 = dma.done [#allocation3], 4096
    $region25: #{tpu_custom_call.1} parent=1 // pred_fallthru
      _
    %v35 = vld [vmem:[%s0] sm:$0xff]
    %v36 = vld [vmem:[%s0 + $0x8] sm:$0xff]
    %v37 = vpack.c.bf16 %v35, %v35
    %v38 = vpack.c.bf16 %v36, %v36
    %v39 = vld [vmem:[#allocation2] sm:$0xff]
    %v40 = vld [vmem:[#allocation2 + $0x8] sm:$0xff]
    %v41 = vld [vmem:[#allocation2 + $0x10] sm:$0xff]
    %v42 = vld [vmem:[#allocation2 + $0x18] sm:$0xff]
    %v43 = vld [vmem:[#allocation2 + $0x20] sm:$0xff]
    %v44 = vld [vmem:[#allocation2 + $0x28] sm:$0xff]
    %v45 = vld [vmem:[#allocation2 + $0x30] sm:$0xff]
    %v46 = vld [vmem:[#allocation2 + $0x38] sm:$0xff]
    %v47 = vld [vmem:[#allocation2 + $0x40] sm:$0xff]
    %v48 = vld [vmem:[#allocation2 + $0x48] sm:$0xff]
    %v49 = vld [vmem:[#allocation2 + $0x50] sm:$0xff]
    %v50 = vld [vmem:[#allocation2 + $0x58] sm:$0xff]
    %v51 = vld [vmem:[#allocation2 + $0x60] sm:$0xff]
    %v52 = vld [vmem:[#allocation2 + $0x68] sm:$0xff]
    %v53 = vld [vmem:[#allocation2 + $0x70] sm:$0xff]
    %v54 = vld [vmem:[#allocation2 + $0x78] sm:$0xff]
    %v55 = vld [vmem:[#allocation2 + $0x80] sm:$0xff]
    %v56 = vld [vmem:[#allocation2 + $0x88] sm:$0xff]
    %v57 = vld [vmem:[#allocation2 + $0x90] sm:$0xff]
    %v58 = vld [vmem:[#allocation2 + $0x98] sm:$0xff]
    %v59 = vld [vmem:[#allocation2 + $0xa0] sm:$0xff]
    %v60 = vld [vmem:[#allocation2 + $0xa8] sm:$0xff]
    %v61 = vld [vmem:[#allocation2 + $0xb0] sm:$0xff]
    %v62 = vld [vmem:[#allocation2 + $0xb8] sm:$0xff]
    %v63 = vld [vmem:[#allocation2 + $0xc0] sm:$0xff]
    %v64 = vld [vmem:[#allocation2 + $0xc8] sm:$0xff]
    %v65 = vld [vmem:[#allocation2 + $0xd0] sm:$0xff]
    %v66 = vld [vmem:[#allocation2 + $0xd8] sm:$0xff]
    %v67 = vld [vmem:[#allocation2 + $0xe0] sm:$0xff]
    %v68 = vld [vmem:[#allocation2 + $0xe8] sm:$0xff]
    %v69 = vld [vmem:[#allocation2 + $0xf0] sm:$0xff]
    %v70 = vld [vmem:[#allocation2 + $0xf8] sm:$0xff]
    %v71 = vpack.c.bf16 %v40, %v39
    %v72 = vpack.c.bf16 %v42, %v41
    %v73 = vpack.c.bf16 %v44, %v43
    %v74 = vpack.c.bf16 %v46, %v45
    %v75 = vpack.c.bf16 %v48, %v47
    %v76 = vpack.c.bf16 %v50, %v49
    %v77 = vpack.c.bf16 %v52, %v51
    %v78 = vpack.c.bf16 %v54, %v53
    %v79 = vpack.c.bf16 %v56, %v55
    %v80 = vpack.c.bf16 %v58, %v57
    %v81 = vpack.c.bf16 %v60, %v59
    %v82 = vpack.c.bf16 %v62, %v61
    %v83 = vpack.c.bf16 %v64, %v63
    %v84 = vpack.c.bf16 %v66, %v65
    %v85 = vpack.c.bf16 %v68, %v67
    %v86 = vpack.c.bf16 %v70, %v69
    %v87 = vld [vmem:[%s2] sm:$0x1]
    %v89 = vlaneseq
    %v90 = vshrl.u32 %v89, 7
    %v91 = vsub.s32 0, %v90
    %v92 = vrot.slane %v87, %v91
    %94 = vmatprep.subr.bf16.mxu0 0
    %95 = vmatpush1.bf16.msra.mxu0 %v78
    %96 = vmatprep.subr.bf16.mxu0 0
    %97 = vmatpush1.bf16.msra.mxu0 %v77
    %98 = vmatprep.subr.bf16.mxu0 0
    %99 = vmatpush1.bf16.msra.mxu0 %v76
    %100 = vmatprep.subr.bf16.mxu0 0
    %101 = vmatpush1.bf16.msra.mxu0 %v75
    %102 = vmatprep.subr.bf16.mxu0 0
    %103 = vmatpush1.bf16.msra.mxu0 %v74
    %104 = vmatprep.subr.bf16.mxu0 0
    %105 = vmatpush1.bf16.msra.mxu0 %v73
    %106 = vmatprep.subr.bf16.mxu0 0
    %107 = vmatpush1.bf16.msra.mxu0 %v72
    %108 = vmatprep.subr.bf16.mxu0 0
    %109 = vmatpush1.bf16.msra.mxu0 %v71
    %110 = vmatprep.subr.bf16.mxu0 0
    %111 = vmatpush2.bf16.msra.mxu0 %v86
    %112 = vmatprep.subr.bf16.mxu0 0
    %113 = vmatpush2.bf16.msra.mxu0 %v85
    %114 = vmatprep.subr.bf16.mxu0 0
    %115 = vmatpush2.bf16.msra.mxu0 %v84
    %116 = vmatprep.subr.bf16.mxu0 0
    %117 = vmatpush2.bf16.msra.mxu0 %v83
    %118 = vmatprep.subr.bf16.mxu0 0
    %119 = vmatpush2.bf16.msra.mxu0 %v82
    %120 = vmatprep.subr.bf16.mxu0 0
    %121 = vmatpush2.bf16.msra.mxu0 %v81
    %122 = vmatprep.subr.bf16.mxu0 0
    %123 = vmatpush2.bf16.msra.mxu0 %v80
    %124 = vmatprep.subr.bf16.mxu0 0
    %125 = vmatpush2.bf16.msra.mxu0 %v79
    %126 = vmatprep.mubr.bf16.mxu0 %v38
    %127 = vmatmul.mubr.bf16.gmra.mxu0 %v37
    %v128 = vpop.f32.mrf.mxu0
    %v129 = vadd.f32 %v92, %v128
    %v130 = vpop.f32.mrf.mxu0
    %v131 = vpop.f32.mrf.mxu0
    %v132 = vpop.f32.mrf.mxu0
    %133 = vdwg.mxu0
    %v134 = vmax.f32 %v129, 0.0
    %v135 = vpack.c.bf16 %v134, %v134
    %v136 = vld [vmem:[%s3] sm:$0xff]
    %v137 = vld [vmem:[%s3 + $0x8] sm:$0xff]
    %v138 = vld [vmem:[%s3 + $0x10] sm:$0xff]
    %v139 = vld [vmem:[%s3 + $0x18] sm:$0xff]
    %v140 = vld [vmem:[%s3 + $0x20] sm:$0xff]
    %v141 = vld [vmem:[%s3 + $0x28] sm:$0xff]
    %v142 = vld [vmem:[%s3 + $0x30] sm:$0xff]
    %v143 = vld [vmem:[%s3 + $0x38] sm:$0xff]
    %v144 = vld [vmem:[%s3 + $0x40] sm:$0xff]
    %v145 = vld [vmem:[%s3 + $0x48] sm:$0xff]
    %v146 = vld [vmem:[%s3 + $0x50] sm:$0xff]
    %v147 = vld [vmem:[%s3 + $0x58] sm:$0xff]
    %v148 = vld [vmem:[%s3 + $0x60] sm:$0xff]
    %v149 = vld [vmem:[%s3 + $0x68] sm:$0xff]
    %v150 = vld [vmem:[%s3 + $0x70] sm:$0xff]
    %v151 = vld [vmem:[%s3 + $0x78] sm:$0xff]
    %v152 = vpack.c.bf16 %v137, %v136
    %v153 = vpack.c.bf16 %v139, %v138
    %v154 = vpack.c.bf16 %v141, %v140
    %v155 = vpack.c.bf16 %v143, %v142
    %v156 = vpack.c.bf16 %v145, %v144
    %v157 = vpack.c.bf16 %v147, %v146
    %v158 = vpack.c.bf16 %v149, %v148
    %v159 = vpack.c.bf16 %v151, %v150
    %v160 = vld [vmem:[%s4] sm:$0x1]
    %v162 = vlaneseq
    %v163 = vshrl.u32 %v162, 7
    %v164 = vsub.s32 0, %v163
    %v165 = vrot.slane %v160, %v164
    %167 = vmatprep.subr.bf16.mxu0 0
    %168 = vmatpush1.bf16.msra.mxu0 %v159
    %169 = vmatprep.subr.bf16.mxu0 0
    %170 = vmatpush1.bf16.msra.mxu0 %v158
    %171 = vmatprep.subr.bf16.mxu0 0
    %172 = vmatpush1.bf16.msra.mxu0 %v157
    %173 = vmatprep.subr.bf16.mxu0 0
    %174 = vmatpush1.bf16.msra.mxu0 %v156
    %175 = vmatprep.subr.bf16.mxu0 0
    %176 = vmatpush1.bf16.msra.mxu0 %v155
    %177 = vmatprep.subr.bf16.mxu0 0
    %178 = vmatpush1.bf16.msra.mxu0 %v154
    %179 = vmatprep.subr.bf16.mxu0 0
    %180 = vmatpush1.bf16.msra.mxu0 %v153
    %181 = vmatprep.subr.bf16.mxu0 0
    %182 = vmatpush1.bf16.msra.mxu0 %v152
    %183 = vmatprep.subr.bf16.mxu0 0
    %184 = vmatpush2.bf16.msra.mxu0 0
    %185 = vmatprep.subr.bf16.mxu0 0
    %186 = vmatpush2.bf16.msra.mxu0 0
    %187 = vmatprep.subr.bf16.mxu0 0
    %188 = vmatpush2.bf16.msra.mxu0 0
    %189 = vmatprep.subr.bf16.mxu0 0
    %190 = vmatpush2.bf16.msra.mxu0 0
    %191 = vmatprep.subr.bf16.mxu0 0
    %192 = vmatpush2.bf16.msra.mxu0 0
    %193 = vmatprep.subr.bf16.mxu0 0
    %194 = vmatpush2.bf16.msra.mxu0 0
    %195 = vmatprep.subr.bf16.mxu0 0
    %196 = vmatpush2.bf16.msra.mxu0 0
    %197 = vmatprep.subr.bf16.mxu0 0
    %198 = vmatpush2.bf16.msra.mxu0 0
    %199 = vmatprep.mubr.bf16.mxu0 0
    %200 = vmatmul.mubr.bf16.gmra.mxu0 %v135
    %v201 = vpop.f32.mrf.mxu0
    %v202 = vadd.f32 %v165, %v201
    %v203 = vpop.f32.mrf.mxu0
    %v204 = vpop.f32.mrf.mxu0
    %v205 = vpop.f32.mrf.mxu0
    %206 = vdwg.mxu0
    %vm207 = vcmask 15360
    %208 = vst.msk [vmem:[%s5] sm:$0xff] %vm207, %v202
    // Predicated region
    $region26: #{tpu_custom_call.1} parent=1 // pred_check
      _
    $region27: #{tpu_custom_call.1} parent=1 // pred_check_branch
      %210 = sbr.rel (0) target = $region29
    $region28: #{tpu_custom_call.1} parent=1 // pred_region
      _
    $region29: #{tpu_custom_call.1} parent=1 // pred_fallthru
      _
    // Predicated region
    $region30: #{tpu_custom_call.1} parent=1 // pred_check
      _
    $region31: #{tpu_custom_call.1} parent=1 // pred_check_branch
      %212 = sbr.rel (0) target = $region33
    $region32: #{tpu_custom_call.1} parent=1 // pred_region
      _
    $region33: #{tpu_custom_call.1} parent=1 // pred_fallthru
      _
    %213 = vsyncpa [#allocation3], 1

</llo_original>
